<compile_context>
chip_gen: v7x
topology: tpu7x:2x2x1
jax: 0.10.0
libtpu: 0.0.40
codegen_flags: <defaults>
</compile_context>

<pallas_src>
import jax
import jax.numpy as jnp
from jax.experimental import pallas as pl
from jax.experimental.pallas import tpu as pltpu

LANES = 128      # vreg lane width (last-dim tile)
SUBLANES = 8     # f32 sublane count (second-minor tile)


def _logreg_kernel(x_ref, wb_ref, o_ref):
    # x_ref: (block_rows, 128) f32 VMEM tile; wb_ref: (2,) f32 in SMEM.
    w = wb_ref[0]
    b = wb_ref[1]
    z = x_ref[...] * w + b                       # VPU fused multiply-add
    # Exact, stable sigmoid: sigmoid(z) = 0.5 * tanh(z/2) + 0.5 (one EUP op,
    # no overflow for large |z|; kernel is HBM-bound so exactness is free).
    o_ref[...] = 0.5 * jnp.tanh(0.5 * z) + 0.5


def logistic_regression(x, w, b, *, block_rows=2048):
    """x: (N, 1) f32; w: (1, 1); b: (1,) or (1, 1) -> (N, 1) sigmoid(x*w + b)."""
    n, f = x.shape
    assert f == 1

    # Lane-dense layout: flatten the N scalars into (rows, 128) so every f32
    # vreg carries 128 useful lanes and stores are wide unmasked vst.
    # Pad only to the 8x128 boundary (NOT to a multiple of the block).
    rows = max(SUBLANES, pl.cdiv(pl.cdiv(n, LANES), SUBLANES) * SUBLANES)
    n_pad = rows * LANES

    flat = x.reshape(-1)
    if n_pad != n:
        flat = jnp.pad(flat, (0, n_pad - n))     # ragged tail only; fusable
    x2d = flat.reshape(rows, LANES)

    # Tile selection: large tiles amortize the ~0.35us per-grid-step overhead;
    # cap at 4096 rows (2 MiB per buffer -> ~8 MiB double-buffered in+out,
    # under v5e's 16 MiB scoped-VMEM default) and keep >= 2 grid steps when
    # possible so both v7x TensorCores stream HBM.
    block_rows = max(SUBLANES, min(block_rows, 4096))
    block_rows = (block_rows // SUBLANES) * SUBLANES
    if rows >= 2 * SUBLANES:
        half = (rows // 2) // SUBLANES * SUBLANES
        block_rows = min(block_rows, max(SUBLANES, half))
    block_rows = min(block_rows, rows)

    # Scalar params ride the SMEM path as one flat (2,) array.
    wb = jnp.concatenate(
        [jnp.asarray(w, jnp.float32).reshape(-1),
         jnp.asarray(b, jnp.float32).reshape(-1)]
    )

    grid = (pl.cdiv(rows, block_rows),)
    out2d = pl.pallas_call(
        _logreg_kernel,
        out_shape=jax.ShapeDtypeStruct((rows, LANES), jnp.float32),
        grid_spec=pl.GridSpec(
            grid=grid,
            in_specs=[
                pl.BlockSpec((block_rows, LANES), lambda i: (i, 0)),  # x tile
                pl.BlockSpec(memory_space=pltpu.SMEM),                # (w, b)
            ],
            out_specs=pl.BlockSpec((block_rows, LANES), lambda i: (i, 0)),
        ),
        compiler_params=pltpu.CompilerParams(
            dimension_semantics=("parallel",),
            # Allow XLA to fuse the (rare) pad/reshape of x into the input DMA
            # instead of materializing an extra HBM copy of the input.
            allow_input_fusion=[True, False],
        ),
    )(x2d, wb)

    # Common case (n == n_pad): reshape + slice are free views, no extra pass.
    out = out2d.reshape(-1)
    if n_pad != n:
        out = out[:n]
    return out.reshape(n, 1)


def reference(x, w, b):
    return jax.nn.sigmoid(x * jnp.asarray(w).reshape(()) + jnp.asarray(b).reshape(()))


if __name__ == "__main__":
    key = jax.random.PRNGKey(0)
    kx, kw, kb = jax.random.split(key, 3)

    # nn.Linear(1, 1) parameters: weight (1, 1), bias (1,).
    w = jax.random.uniform(kw, (1, 1), jnp.float32, minval=-1.0, maxval=1.0)
    b = jax.random.uniform(kb, (1,), jnp.float32, minval=-1.0, maxval=1.0)

    # Small batch of scalar features, matching the module's forward: (N, 1).
    x = jax.random.normal(kx, (8, 1), jnp.float32)
    out = logistic_regression(x, w, b)
    jax.block_until_ready(out)
    assert out.shape == (8, 1)
    assert jnp.allclose(out, reference(x, w, b), atol=1e-6, rtol=1e-6)

    # N a multiple of 1024: no padding, no output slice, 2-step parallel grid.
    x_even = jax.random.normal(jax.random.PRNGKey(1), (2048, 1), jnp.float32)
    out_even = logistic_regression(x_even, w, b)
    jax.block_until_ready(out_even)
    assert out_even.shape == (2048, 1)
    assert jnp.allclose(out_even, reference(x_even, w, b), atol=1e-6, rtol=1e-6)

    # Ragged batch: exercises the tail-padding path with default (large) tiles.
    x_big = jax.random.normal(jax.random.PRNGKey(2), (3000, 1), jnp.float32)
    out_big = logistic_regression(x_big, w, b)
    jax.block_until_ready(out_big)
    assert out_big.shape == (3000, 1)
    assert jnp.allclose(out_big, reference(x_big, w, b), atol=1e-6, rtol=1e-6)

    print("KERNEL_OK")
</pallas_src>

<mosaic_0001>
module attributes {stable_mosaic.version = 11 : i64} {
  func.func @_logreg_kernel(%arg0: i32, %arg1: memref<8x128xf32, #tpu.memory_space<vmem>>, %arg2: memref<2xf32, #tpu.memory_space<smem>>, %arg3: memref<8x128xf32, #tpu.memory_space<vmem>>) attributes {dimension_semantics = [#tpu.dimension_semantics<parallel>], iteration_bounds = array<i64: 1>, scalar_prefetch = 0 : i64, scratch_operands = 0 : i64, tpu.core_type = #tpu.core_type<tc>, window_params = [{transform_indices = @transform_0, window_bounds = array<i64: 8, 128>}, {transform_indices = @transform_1, window_bounds = array<i64: 2>}, {transform_indices = @transform_2, window_bounds = array<i64: 8, 128>}]} {
    %c0 = arith.constant 0 : index
    %0 = memref.load %arg2[%c0] : memref<2xf32, #tpu.memory_space<smem>>
    %c1 = arith.constant 1 : index
    %1 = memref.load %arg2[%c1] : memref<2xf32, #tpu.memory_space<smem>>
    %c0_0 = arith.constant 0 : index
    %c0_1 = arith.constant 0 : index
    %2 = vector.load %arg1[%c0_0, %c0_1] : memref<8x128xf32, #tpu.memory_space<vmem>>, vector<8x128xf32>
    %3 = vector.broadcast %0 : f32 to vector<8x128xf32>
    %4 = arith.mulf %2, %3 : vector<8x128xf32>
    %5 = vector.broadcast %1 : f32 to vector<8x128xf32>
    %6 = arith.addf %4, %5 : vector<8x128xf32>
    %cst = arith.constant 5.000000e-01 : f32
    %7 = vector.broadcast %cst : f32 to vector<8x128xf32>
    %8 = arith.mulf %7, %6 : vector<8x128xf32>
    %9 = math.tanh %8 : vector<8x128xf32>
    %cst_2 = arith.constant 5.000000e-01 : f32
    %10 = vector.broadcast %cst_2 : f32 to vector<8x128xf32>
    %11 = arith.mulf %10, %9 : vector<8x128xf32>
    %cst_3 = arith.constant 5.000000e-01 : f32
    %12 = vector.broadcast %cst_3 : f32 to vector<8x128xf32>
    %13 = arith.addf %11, %12 : vector<8x128xf32>
    %c0_4 = arith.constant 0 : index
    %c0_5 = arith.constant 0 : index
    %14 = vector.load %arg3[%c0_4, %c0_5] : memref<8x128xf32, #tpu.memory_space<vmem>>, vector<8x128xf32>
    tpu.vector_store %arg3[%c0_4, %c0_5], %13 {strides = array<i32>} : memref<8x128xf32, #tpu.memory_space<vmem>>, vector<8x128xf32>,
    return
  }
  func.func @transform_0(%arg0: i32) -> (i32, i32) {
    %c0_i32 = arith.constant 0 : i32
    %c0_i32_0 = arith.constant 0 : i32
    return %arg0, %c0_i32 : i32, i32
  }
  func.func @transform_1(%arg0: i32) -> i32 {
    %c0_i32 = arith.constant 0 : i32
    %c0_i32_0 = arith.constant 0 : i32
    return %c0_i32 : i32
  }
  func.func @transform_2(%arg0: i32) -> (i32, i32) {
    %c0_i32 = arith.constant 0 : i32
    %c0_i32_0 = arith.constant 0 : i32
    return %arg0, %c0_i32 : i32, i32
  }
}

</mosaic_0001>

<llo_original>
// kernel: tpu_custom_call.1
$region0: #{tpu_custom_call.1}
  #allocation0 [shape = 'u32[]', space=smem, size = 0x4, offset = 0x4, fixed_abs, tag = 'smem constant byte address 0x4 - core index']
  #allocation1 [shape = 'u32[144,128]{1,0:T(1,128)}', space=vmem, size = 0x12000, scoped, tag = 'internal scratch']
  %s0 = inlined_call_operand.hbm [shape: f32[8,128], index: 0, kind: input, shape index: {}]
  %s1 = inlined_call_operand.vmem [shape: f32[2], index: 1, kind: input, shape index: {}]
  %s2 = inlined_call_operand.hbm [shape: f32[8,128], index: 2, kind: output, shape index: {}]
  %s3 = sld [smem:[#allocation0]]
  $region26: #{tpu_custom_call.1} parent=0
    _
  %s5 = ssub.s32 1, %s3
  %s6 = scalar_select 0, %s5, %s3
  $region1: #{tpu_custom_call.1} parent=0
    #allocation2 [shape = 'u8[4096]{0}', space=vmem, size = 0x1000, scoped, tag = 'input window, operand 0, single buffered']
    #allocation3 [shape = 's32[1]{0}', space=sflag, size = 0x4, scoped, tag = 'scoped memory for tpu_custom_call.1']
    #allocation4 [shape = 's32[1]{0}', space=sflag, size = 0x4, scoped, tag = 'scoped memory for tpu_custom_call.1']
    #allocation5 [shape = 's32[1]{0}', space=sflag, size = 0x4, scoped, tag = 'scoped memory for tpu_custom_call.1']
    #allocation6 [shape = 'u8[512]{0}', space=smem, size = 0x200, scoped, tag = 'input window, operand 1, single buffered']
    #allocation7 [shape = 'u8[4096]{0}', space=vmem, size = 0x1000, scoped, tag = 'output window, operand 0, single buffered']
    %7 = vsyncpa [#allocation3], 0
    %8 = vsyncpa [#allocation5], 0
    %9 = vsyncpa [#allocation4], 0
    // Predicated region
    $region2: #{tpu_custom_call.1} parent=1 // pred_check
      _
    $region3: #{tpu_custom_call.1} parent=1 // pred_check_branch
      %11 = sbr.rel (0) target = $region5
    $region4: #{tpu_custom_call.1} parent=1 // pred_region
      %s13 = ssub.s32 128, 128
      %14 = vsyncadd [#allocation3], %s13
      %s16 = sshll.u32 [#allocation2], 4
      %s17 = int_to_ptr.vmem [resolvable:$true] %s16
      %19 = dma.hbm_to_vmem [thread:$0]  %s0, 128, %s17, [#allocation3]
    $region5: #{tpu_custom_call.1} parent=1 // pred_fallthru
      _
    // Predicated region
    $region6: #{tpu_custom_call.1} parent=1 // pred_check
      _
    $region7: #{tpu_custom_call.1} parent=1 // pred_check_branch
      %21 = sbr.rel (0) target = $region9
    $region8: #{tpu_custom_call.1} parent=1 // pred_region
      %s23 = ssub.s32 16, 16
      %24 = vsyncadd [#allocation5], %s23
      %s26 = sshll.u32 %s1, 4
      %s27 = int_to_ptr.vmem [resolvable:$true] %s26
      %29 = dma.vmem_to_smem %s27, 16, [#allocation6], [#allocation5]
    $region9: #{tpu_custom_call.1} parent=1 // pred_fallthru
      _
    // Predicated region
    $region10: #{tpu_custom_call.1} parent=1 // pred_check
      _
    $region11: #{tpu_custom_call.1} parent=1 // pred_check_branch
      %31 = sbr.rel (0) target = $region13
    $region12: #{tpu_custom_call.1} parent=1 // pred_region
      %32 = dma.done [#allocation3], 128
    $region13: #{tpu_custom_call.1} parent=1 // pred_fallthru
      _
    // Predicated region
    $region14: #{tpu_custom_call.1} parent=1 // pred_check
      _
    $region15: #{tpu_custom_call.1} parent=1 // pred_check_branch
      %34 = sbr.rel (0) target = $region17
    $region16: #{tpu_custom_call.1} parent=1 // pred_region
      %35 = dma.done [#allocation5], 16
    $region17: #{tpu_custom_call.1} parent=1 // pred_fallthru
      _
    %36 = sfence
    %s37 = sld [smem:[#allocation6]]
    %s38 = sld [smem:[#allocation6 + $0x1]]
    %v39 = vld [vmem:[#allocation2] sm:$0xff]
    %v40 = vstv %s37
    %v41 = vmul.f32 %v39, %v40
    %v42 = vstv %s38
    %v43 = vadd.f32 %v41, %v42
    %v44 = vmul.f32 %v43, 0.5
    %v45 = vtanh.pop %v44
    %v46 = vmul.f32 %v45, 0.5
    %v47 = vadd.f32 %v46, 0.5
    %48 = vst [vmem:[#allocation7] sm:$0xff] %v47
    // Predicated region
    $region18: #{tpu_custom_call.1} parent=1 // pred_check
      _
    $region19: #{tpu_custom_call.1} parent=1 // pred_check_branch
      %50 = sbr.rel (0) target = $region21
    $region20: #{tpu_custom_call.1} parent=1 // pred_region
      %s52 = ssub.s32 128, 128
      %53 = vsyncadd [#allocation4], %s52
      %s55 = sshll.u32 [#allocation7], 4
      %s56 = int_to_ptr.vmem [resolvable:$true] %s55
      %58 = dma.vmem_to_hbm [thread:$0]  %s56, 128, %s2, [#allocation4]
    $region21: #{tpu_custom_call.1} parent=1 // pred_fallthru
      _
    // Predicated region
    $region22: #{tpu_custom_call.1} parent=1 // pred_check
      _
    $region23: #{tpu_custom_call.1} parent=1 // pred_check_branch
      %60 = sbr.rel (0) target = $region25
    $region24: #{tpu_custom_call.1} parent=1 // pred_region
      %61 = dma.done [#allocation4], 128
    $region25: #{tpu_custom_call.1} parent=1 // pred_fallthru
      _
    %62 = vsyncpa [#allocation3], 1
    %63 = vsyncpa [#allocation4], 1
    %64 = vsyncpa [#allocation5], 1

</llo_original>
